<compile_context>
chip_gen: v6e
topology: v6e:2x2x1
jax: 0.10.0
libtpu: 0.0.40
codegen_flags: <defaults>
</compile_context>

<pallas_src>
import functools

import jax
import jax.numpy as jnp
from jax import lax
from jax.experimental import pallas as pl
from jax.experimental.pallas import tpu as pltpu


def _attention_kernel(x_ref, wq_ref, wk_ref, wv_ref, wp_ref, bp_ref, o_ref, acc_ref,
                      *, compute_dtype):
    """One (batch-tile, head) grid step.

    x_ref  : (BB, N, C) activations for this batch tile (compute dtype, resident across h)
    wq_ref : (C, D)     this head's q projection (scale pre-folded)
    wk_ref : (C, D)     this head's k projection
    wv_ref : (C, D)     this head's v projection
    wp_ref : (D, C)     this head's slice of the output projection
    bp_ref : (1, C)     output-projection bias (f32)
    o_ref  : (BB, N, C) output block (written once, at the last head)
    acc_ref: (BB, N, C) f32 VMEM accumulator, persists across the head axis
    """
    h = pl.program_id(1)

    @pl.when(h == 0)
    def _init():
        # Seed the accumulator with the broadcast proj bias -> no extra add at
        # finalize.  (Runs once per batch tile, so the broadcast is not in a loop.)
        acc_ref[...] = jnp.broadcast_to(bp_ref[...].astype(jnp.float32), acc_ref.shape)

    x = x_ref[...]                                                    # (BB, N, C)
    BB, N, C = x.shape
    D = wq_ref.shape[-1]

    # Per-head projections on the MXU with BB*N rows per matmul.
    # (The leading-dim collapse is layout-free because BB > 1 only when N % 8 == 0.)
    x2 = x.reshape(BB * N, C)
    q = jnp.dot(x2, wq_ref[...], preferred_element_type=compute_dtype).reshape(BB, N, D)
    k = jnp.dot(x2, wk_ref[...], preferred_element_type=compute_dtype).reshape(BB, N, D)
    v = jnp.dot(x2, wv_ref[...], preferred_element_type=compute_dtype).reshape(BB, N, D)

    # Scores: batched contraction over the head dim -- no explicit transpose
    # (avoids an XLU vxpose per head).  `scale` is folded into wq.
    s = jnp.einsum("bnd,bmd->bnm", q, k,
                   preferred_element_type=jnp.float32)                # (BB, N, N) f32

    # Numerically-stable, *unnormalized* softmax; normalization deferred to p@v.
    s = s - jnp.max(s, axis=-1, keepdims=True)
    p = jnp.exp(s)
    denom = jnp.sum(p, axis=-1, keepdims=True)                        # (BB, N, 1), >= 1
    # attn_drop is identity (p = 0.0 / eval semantics).

    pv = jnp.einsum("bnm,bmd->bnd", p.astype(compute_dtype), v,
                    preferred_element_type=jnp.float32)               # (BB, N, D) f32

    if jnp.dtype(compute_dtype) == jnp.dtype(jnp.float32):
        o_h = pv / denom                                              # exact path
    else:
        o_h = pv * pl.reciprocal(denom, approx=True)                  # EUP reciprocal

    # Fused output projection: accumulate o_h @ Wproj[h*D:(h+1)*D, :].
    # (Removes the per-head concatenate entirely.)
    acc_ref[...] += jnp.dot(o_h.astype(compute_dtype).reshape(BB * N, D), wp_ref[...],
                            preferred_element_type=jnp.float32).reshape(BB, N, C)

    @pl.when(h == pl.num_programs(1) - 1)
    def _finalize():
        # proj bias already folded into the accumulator; proj_drop is identity.
        o_ref[...] = acc_ref[...].astype(o_ref.dtype)


def _pick_batch_block(B, N, C, D, compute_bytes, out_bytes, budget_bytes=6 * 1024 * 1024):
    """Largest divisor of B whose per-step VMEM footprint fits the budget."""
    if N % 8 != 0:
        # TODO(synk): allow BB > 1 for N % 8 != 0 (e.g. spatial N=197) by using a
        # fully batched dot_general for the projections instead of the reshape.
        return 1
    per_b = (2 * N * C * compute_bytes      # x block (double-buffered)
             + 2 * N * C * out_bytes        # output block (double-buffered)
             + N * C * 4                    # f32 accumulator scratch
             + 3 * N * D * compute_bytes    # q, k, v
             + 2 * N * N * 4                # scores + probs (f32)
             + N * D * 4 + N * C * 4)       # pv + proj partial
    bb = 1
    for cand in range(1, B + 1):
        if B % cand == 0 and cand * per_b <= budget_bytes:
            bb = cand
    return bb


def attention_forward(x, wqkv_t, wproj_t, bproj, *, num_heads,
                      compute_dtype=jnp.bfloat16, batch_block=None):
    """x: (B, N, C); wqkv_t: (C, 3C) (= W_qkv^T); wproj_t: (C, C) (= W_proj^T); bproj: (1, C)."""
    B, N, C = x.shape
    H = num_heads
    D = C // H
    scale = D ** (-0.5)
    out_dtype = x.dtype

    # --- weight prep (plain XLA; in a real model this is done once at load time) ---
    # qkv columns are laid out [q | k | v], head-major within each block.
    w3 = wqkv_t.reshape(C, 3, H, D)
    wq = (jnp.transpose(w3[:, 0], (1, 0, 2)) * scale).astype(compute_dtype)  # (H, C, D), scale folded
    wk = jnp.transpose(w3[:, 1], (1, 0, 2)).astype(compute_dtype)            # (H, C, D)
    wv = jnp.transpose(w3[:, 2], (1, 0, 2)).astype(compute_dtype)            # (H, C, D)
    wp = wproj_t.reshape(H, D, C).astype(compute_dtype)                      # (H, D, C)
    xc = x.astype(compute_dtype)
    bp = bproj.astype(jnp.float32)

    if batch_block is None:
        batch_block = _pick_batch_block(
            B, N, C, D,
            compute_bytes=jnp.dtype(compute_dtype).itemsize,
            out_bytes=jnp.dtype(out_dtype).itemsize)
    assert B % batch_block == 0
    BB = batch_block

    kernel = functools.partial(_attention_kernel, compute_dtype=compute_dtype)

    # TODO(synk): for very large N (joint space-time attention) switch to a
    # flash-style (query-tile x kv-tile) grid with online softmax instead of a
    # full (N, N) score tile.
    return pl.pallas_call(
        kernel,
        out_shape=jax.ShapeDtypeStruct((B, N, C), out_dtype),
        grid=(B // BB, H),
        in_specs=[
            pl.BlockSpec((BB, N, C), lambda b, h: (b, 0, 0)),     # x tile, resident across h
            pl.BlockSpec((None, C, D), lambda b, h: (h, 0, 0)),   # per-head Wq (pre-scaled)
            pl.BlockSpec((None, C, D), lambda b, h: (h, 0, 0)),   # per-head Wk
            pl.BlockSpec((None, C, D), lambda b, h: (h, 0, 0)),   # per-head Wv
            pl.BlockSpec((None, D, C), lambda b, h: (h, 0, 0)),   # per-head Wproj slice
            pl.BlockSpec((1, C), lambda b, h: (0, 0)),            # proj bias
        ],
        out_specs=pl.BlockSpec((BB, N, C), lambda b, h: (b, 0, 0)),
        scratch_shapes=[pltpu.VMEM((BB, N, C), jnp.float32)],
        compiler_params=pltpu.CompilerParams(
            dimension_semantics=("parallel", "arbitrary"),
        ),
    )(xc, wq, wk, wv, wp, bp)


def attention_reference(x, wqkv_t, wproj_t, bproj, *, num_heads):
    """Pure-JAX (f32) reference mirroring the PyTorch forward exactly."""
    B, N, C = x.shape
    D = C // num_heads
    scale = D ** (-0.5)
    qkv = jnp.einsum("bnc,cd->bnd", x, wqkv_t)                        # (B, N, 3C)
    qkv = qkv.reshape(B, N, 3, num_heads, D).transpose(2, 0, 3, 1, 4)
    q, k, v = qkv[0], qkv[1], qkv[2]                                  # (B, H, N, D)
    attn = jnp.einsum("bhnd,bhmd->bhnm", q, k) * scale
    attn = jax.nn.softmax(attn, axis=-1)
    out = jnp.einsum("bhnm,bhmd->bhnd", attn, v)
    out = out.transpose(0, 2, 1, 3).reshape(B, N, C)
    out = jnp.einsum("bnc,cd->bnd", out, wproj_t) + bproj[0]
    return out


if __name__ == "__main__":
    # Small shapes consistent with the module (dim divisible by num_heads).
    B, N, C = 2, 8, 32
    num_heads = 8

    key = jax.random.PRNGKey(0)
    kx, kw1, kw2, kb = jax.random.split(key, 4)

    x = jax.random.normal(kx, (B, N, C), dtype=jnp.float32)
    # nn.Linear-equivalent parameters, stored transposed (in_features, out_features).
    wqkv_t = jax.random.normal(kw1, (C, 3 * C), dtype=jnp.float32) * 0.05   # qkv_bias=False
    wproj_t = jax.random.normal(kw2, (C, C), dtype=jnp.float32) * 0.05
    bproj = jax.random.normal(kb, (1, C), dtype=jnp.float32) * 0.05

    ref = attention_reference(x, wqkv_t, wproj_t, bproj, num_heads=num_heads)

    # Exactness check: f32 compute path.
    out_f32 = attention_forward(x, wqkv_t, wproj_t, bproj,
                                num_heads=num_heads, compute_dtype=jnp.float32)
    out_f32 = jax.block_until_ready(out_f32)
    assert out_f32.shape == (B, N, C)
    assert jnp.allclose(out_f32, ref, atol=1e-4, rtol=1e-4), "f32 path mismatch vs reference"

    # Performance path: bf16 MXU operands, f32 accumulation.
    out_bf16 = attention_forward(x, wqkv_t, wproj_t, bproj,
                                 num_heads=num_heads, compute_dtype=jnp.bfloat16)
    out_bf16 = jax.block_until_ready(out_bf16)
    assert out_bf16.shape == (B, N, C)
    assert jnp.allclose(out_bf16, ref, atol=2e-2, rtol=2e-2), "bf16 path mismatch vs reference"

    print("KERNEL_OK")
</pallas_src>

<mosaic_0001>
module attributes {stable_mosaic.version = 11 : i64} {
  func.func @_attention_kernel(%arg0: i32, %arg1: i32, %arg2: memref<2x8x32xf32, #tpu.memory_space<vmem>>, %arg3: memref<1x32x4xf32, #tpu.memory_space<vmem>>, %arg4: memref<1x32x4xf32, #tpu.memory_space<vmem>>, %arg5: memref<1x32x4xf32, #tpu.memory_space<vmem>>, %arg6: memref<1x4x32xf32, #tpu.memory_space<vmem>>, %arg7: memref<1x32xf32, #tpu.memory_space<vmem>>, %arg8: memref<2x8x32xf32, #tpu.memory_space<vmem>>, %arg9: memref<2x8x32xf32, #tpu.memory_space<vmem>>) attributes {dimension_semantics = [#tpu.dimension_semantics<parallel>, #tpu.dimension_semantics<arbitrary>], iteration_bounds = array<i64: 1, 8>, scalar_prefetch = 0 : i64, scratch_operands = 1 : i64, tpu.core_type = #tpu.core_type<tc>, window_params = [{transform_indices = @transform_0, window_bounds = array<i64: 2, 8, 32>}, {transform_indices = @transform_1, window_bounds = array<i64: 1, 32, 4>}, {transform_indices = @transform_2, window_bounds = array<i64: 1, 32, 4>}, {transform_indices = @transform_3, window_bounds = array<i64: 1, 32, 4>}, {transform_indices = @transform_4, window_bounds = array<i64: 1, 4, 32>}, {pipeline_mode = #tpu.pipeline_mode<synchronous>, transform_indices = @transform_5, window_bounds = array<i64: 1, 32>}, {transform_indices = @transform_6, window_bounds = array<i64: 2, 8, 32>}]} {
    %c0_i32 = arith.constant 0 : i32
    %0 = arith.cmpi eq, %arg1, %c0_i32 : i32
    %1 = arith.extui %0 : i1 to i32
    %c0_i32_0 = arith.constant 0 : i32
    %2 = arith.cmpi ne, %1, %c0_i32_0 : i32
    scf.if %2 {
      %c0_29 = arith.constant 0 : index
      %c0_30 = arith.constant 0 : index
      %39 = vector.load %arg7[%c0_29, %c0_30] : memref<1x32xf32, #tpu.memory_space<vmem>>, vector<1x32xf32>
      %40 = vector.shape_cast %39 : vector<1x32xf32> to vector<1x1x32xf32>
      %41 = vector.broadcast %40 : vector<1x1x32xf32> to vector<2x8x32xf32>
      %c0_31 = arith.constant 0 : index
      %c0_32 = arith.constant 0 : index
      %c0_33 = arith.constant 0 : index
      %42 = vector.load %arg9[%c0_31, %c0_32, %c0_33] : memref<2x8x32xf32, #tpu.memory_space<vmem>>, vector<2x8x32xf32>
      tpu.vector_store %arg9[%c0_31, %c0_32, %c0_33], %41 {strides = array<i32>} : memref<2x8x32xf32, #tpu.memory_space<vmem>>, vector<2x8x32xf32>,
    } else {
    }
    %c0 = arith.constant 0 : index
    %c0_1 = arith.constant 0 : index
    %c0_2 = arith.constant 0 : index
    %3 = vector.load %arg2[%c0, %c0_1, %c0_2] : memref<2x8x32xf32, #tpu.memory_space<vmem>>, vector<2x8x32xf32>
    %4 = vector.shape_cast %3 : vector<2x8x32xf32> to vector<16x32xf32>
    %c0_3 = arith.constant 0 : index
    %c0_4 = arith.constant 0 : index
    %c0_5 = arith.constant 0 : index
    %5 = vector.load %arg3[%c0_3, %c0_4, %c0_5] : memref<1x32x4xf32, #tpu.memory_space<vmem>>, vector<1x32x4xf32>
    %6 = vector.shape_cast %5 : vector<1x32x4xf32> to vector<32x4xf32>
    %cst = arith.constant dense<0.000000e+00> : vector<16x4xf32>
    %7 = tpu.matmul %4, %6, %cst {dimension_numbers = #tpu.dot_dimension_numbers<[1], [0], [0], [1], [0, 0, 1, 1], [], []>} : vector<16x32xf32>, vector<32x4xf32>, vector<16x4xf32> -> vector<16x4xf32>
    %8 = vector.shape_cast %7 : vector<16x4xf32> to vector<2x8x4xf32>
    %c0_6 = arith.constant 0 : index
    %c0_7 = arith.constant 0 : index
    %c0_8 = arith.constant 0 : index
    %9 = vector.load %arg4[%c0_6, %c0_7, %c0_8] : memref<1x32x4xf32, #tpu.memory_space<vmem>>, vector<1x32x4xf32>
    %10 = vector.shape_cast %9 : vector<1x32x4xf32> to vector<32x4xf32>
    %cst_9 = arith.constant dense<0.000000e+00> : vector<16x4xf32>
    %11 = tpu.matmul %4, %10, %cst_9 {dimension_numbers = #tpu.dot_dimension_numbers<[1], [0], [0], [1], [0, 0, 1, 1], [], []>} : vector<16x32xf32>, vector<32x4xf32>, vector<16x4xf32> -> vector<16x4xf32>
    %12 = vector.shape_cast %11 : vector<16x4xf32> to vector<2x8x4xf32>
    %c0_10 = arith.constant 0 : index
    %c0_11 = arith.constant 0 : index
    %c0_12 = arith.constant 0 : index
    %13 = vector.load %arg5[%c0_10, %c0_11, %c0_12] : memref<1x32x4xf32, #tpu.memory_space<vmem>>, vector<1x32x4xf32>
    %14 = vector.shape_cast %13 : vector<1x32x4xf32> to vector<32x4xf32>
    %cst_13 = arith.constant dense<0.000000e+00> : vector<16x4xf32>
    %15 = tpu.matmul %4, %14, %cst_13 {dimension_numbers = #tpu.dot_dimension_numbers<[1], [0], [0], [1], [0, 0, 1, 1], [], []>} : vector<16x32xf32>, vector<32x4xf32>, vector<16x4xf32> -> vector<16x4xf32>
    %16 = vector.shape_cast %15 : vector<16x4xf32> to vector<2x8x4xf32>
    "tpu.trace_start"() <{level = 10 : i32, message = "bnd,bmd->bnm"}> : () -> ()
    %cst_14 = arith.constant dense<0.000000e+00> : vector<2x8x8xf32>
    %17 = tpu.matmul %8, %12, %cst_14 {dimension_numbers = #tpu.dot_dimension_numbers<[2], [2], [1], [1], [0, 0, 0, 1, 1, 1], [0], [0]>} : vector<2x8x4xf32>, vector<2x8x4xf32>, vector<2x8x8xf32> -> vector<2x8x8xf32>
    "tpu.trace_stop"() : () -> ()
    %cst_15 = arith.constant dense<0xFF800000> : vector<2x8xf32>
    %18 = vector.multi_reduction <maximumf>, %17, %cst_15 [2] : vector<2x8x8xf32> to vector<2x8xf32>
    %19 = vector.shape_cast %18 : vector<2x8xf32> to vector<2x8x1xf32>
    %20 = vector.broadcast %19 : vector<2x8x1xf32> to vector<2x8x8xf32>
    %21 = arith.subf %17, %20 : vector<2x8x8xf32>
    %22 = math.exp %21 : vector<2x8x8xf32>
    %cst_16 = arith.constant dense<0.000000e+00> : vector<2x8xf32>
    %23 = vector.multi_reduction <add>, %22, %cst_16 [2] : vector<2x8x8xf32> to vector<2x8xf32>
    %24 = vector.shape_cast %23 : vector<2x8xf32> to vector<2x8x1xf32>
    "tpu.trace_start"() <{level = 10 : i32, message = "bnm,bmd->bnd"}> : () -> ()
    %cst_17 = arith.constant dense<0.000000e+00> : vector<2x8x4xf32>
    %25 = tpu.matmul %22, %16, %cst_17 {dimension_numbers = #tpu.dot_dimension_numbers<[2], [1], [1], [2], [0, 0, 0, 1, 1, 2], [0], [0]>} : vector<2x8x8xf32>, vector<2x8x4xf32>, vector<2x8x4xf32> -> vector<2x8x4xf32>
    "tpu.trace_stop"() : () -> ()
    %26 = vector.broadcast %24 : vector<2x8x1xf32> to vector<2x8x4xf32>
    %27 = arith.divf %25, %26 : vector<2x8x4xf32>
    %c0_18 = arith.constant 0 : index
    %c0_19 = arith.constant 0 : index
    %c0_20 = arith.constant 0 : index
    %28 = vector.load %arg9[%c0_18, %c0_19, %c0_20] : memref<2x8x32xf32, #tpu.memory_space<vmem>>, vector<2x8x32xf32>
    %29 = vector.shape_cast %27 : vector<2x8x4xf32> to vector<16x4xf32>
    %c0_21 = arith.constant 0 : index
    %c0_22 = arith.constant 0 : index
    %c0_23 = arith.constant 0 : index
    %30 = vector.load %arg6[%c0_21, %c0_22, %c0_23] : memref<1x4x32xf32, #tpu.memory_space<vmem>>, vector<1x4x32xf32>
    %31 = vector.shape_cast %30 : vector<1x4x32xf32> to vector<4x32xf32>
    %cst_24 = arith.constant dense<0.000000e+00> : vector<16x32xf32>
    %32 = tpu.matmul %29, %31, %cst_24 {dimension_numbers = #tpu.dot_dimension_numbers<[1], [0], [0], [1], [0, 0, 1, 1], [], []>} : vector<16x4xf32>, vector<4x32xf32>, vector<16x32xf32> -> vector<16x32xf32>
    %33 = vector.shape_cast %32 : vector<16x32xf32> to vector<2x8x32xf32>
    %34 = arith.addf %28, %33 : vector<2x8x32xf32>
    %c0_25 = arith.constant 0 : index
    %c0_26 = arith.constant 0 : index
    %c0_27 = arith.constant 0 : index
    %35 = vector.load %arg9[%c0_25, %c0_26, %c0_27] : memref<2x8x32xf32, #tpu.memory_space<vmem>>, vector<2x8x32xf32>
    tpu.vector_store %arg9[%c0_25, %c0_26, %c0_27], %34 {strides = array<i32>} : memref<2x8x32xf32, #tpu.memory_space<vmem>>, vector<2x8x32xf32>,
    %c7_i32 = arith.constant 7 : i32
    %36 = arith.cmpi eq, %arg1, %c7_i32 : i32
    %37 = arith.extui %36 : i1 to i32
    %c0_i32_28 = arith.constant 0 : i32
    %38 = arith.cmpi ne, %37, %c0_i32_28 : i32
    scf.if %38 {
      %c0_29 = arith.constant 0 : index
      %c0_30 = arith.constant 0 : index
      %c0_31 = arith.constant 0 : index
      %39 = vector.load %arg9[%c0_29, %c0_30, %c0_31] : memref<2x8x32xf32, #tpu.memory_space<vmem>>, vector<2x8x32xf32>
      %c0_32 = arith.constant 0 : index
      %c0_33 = arith.constant 0 : index
      %c0_34 = arith.constant 0 : index
      %40 = vector.load %arg8[%c0_32, %c0_33, %c0_34] : memref<2x8x32xf32, #tpu.memory_space<vmem>>, vector<2x8x32xf32>
      tpu.vector_store %arg8[%c0_32, %c0_33, %c0_34], %39 {strides = array<i32>} : memref<2x8x32xf32, #tpu.memory_space<vmem>>, vector<2x8x32xf32>,
    } else {
    }
    return
  }
  func.func @transform_0(%arg0: i32, %arg1: i32) -> (i32, i32, i32) {
    %c0_i32 = arith.constant 0 : i32
    %c0_i32_0 = arith.constant 0 : i32
    %c0_i32_1 = arith.constant 0 : i32
    return %arg0, %c0_i32, %c0_i32_0 : i32, i32, i32
  }
  func.func @transform_1(%arg0: i32, %arg1: i32) -> (i32, i32, i32) {
    %c0_i32 = arith.constant 0 : i32
    %c0_i32_0 = arith.constant 0 : i32
    %c0_i32_1 = arith.constant 0 : i32
    return %arg1, %c0_i32, %c0_i32_0 : i32, i32, i32
  }
  func.func @transform_2(%arg0: i32, %arg1: i32) -> (i32, i32, i32) {
    %c0_i32 = arith.constant 0 : i32
    %c0_i32_0 = arith.constant 0 : i32
    %c0_i32_1 = arith.constant 0 : i32
    return %arg1, %c0_i32, %c0_i32_0 : i32, i32, i32
  }
  func.func @transform_3(%arg0: i32, %arg1: i32) -> (i32, i32, i32) {
    %c0_i32 = arith.constant 0 : i32
    %c0_i32_0 = arith.constant 0 : i32
    %c0_i32_1 = arith.constant 0 : i32
    return %arg1, %c0_i32, %c0_i32_0 : i32, i32, i32
  }
  func.func @transform_4(%arg0: i32, %arg1: i32) -> (i32, i32, i32) {
    %c0_i32 = arith.constant 0 : i32
    %c0_i32_0 = arith.constant 0 : i32
    %c0_i32_1 = arith.constant 0 : i32
    return %arg1, %c0_i32, %c0_i32_0 : i32, i32, i32
  }
  func.func @transform_5(%arg0: i32, %arg1: i32) -> (i32, i32) {
    %c0_i32 = arith.constant 0 : i32
    %c0_i32_0 = arith.constant 0 : i32
    %c0_i32_1 = arith.constant 0 : i32
    return %c0_i32, %c0_i32_0 : i32, i32
  }
  func.func @transform_6(%arg0: i32, %arg1: i32) -> (i32, i32, i32) {
    %c0_i32 = arith.constant 0 : i32
    %c0_i32_0 = arith.constant 0 : i32
    %c0_i32_1 = arith.constant 0 : i32
    return %arg0, %c0_i32, %c0_i32_0 : i32, i32, i32
  }
}

</mosaic_0001>

<llo_original>
// kernel: tpu_custom_call.1
$region0: #{tpu_custom_call.1}
  #allocation0 [shape = 'u32[]', space=smem, size = 0x4, offset = 0x4, fixed_abs, tag = 'smem constant byte address 0x4 - core index']
  #allocation1 [shape = 'u32[144,128]{1,0:T(1,128)}', space=vmem, size = 0x12000, scoped, tag = 'internal scratch']
  #allocation2 [shape = 'f32[2,8,32]{2,1,0:T(8,128)}', space=vmem, size = 0x2000, scoped, tag = 'scratch operand']
  %s0 = inlined_call_operand.vmem [shape: f32[2,8,32], index: 0, kind: input, shape index: {}]
  %s1 = inlined_call_operand.vmem [shape: f32[8,32,4], index: 1, kind: input, shape index: {}]
  %s2 = inlined_call_operand.vmem [shape: f32[8,32,4], index: 2, kind: input, shape index: {}]
  %s3 = inlined_call_operand.vmem [shape: f32[8,32,4], index: 3, kind: input, shape index: {}]
  %s4 = inlined_call_operand.vmem [shape: f32[8,4,32], index: 4, kind: input, shape index: {}]
  %s5 = inlined_call_operand.vmem [shape: f32[1,32], index: 5, kind: input, shape index: {}]
  %s6 = inlined_call_operand.hbm [shape: f32[2,8,32], index: 6, kind: output, shape index: {}]
  %s7 = sld [smem:[#allocation0]]
  $region65: #{tpu_custom_call.1} parent=0
    _
  %s9 = ssub.s32 1, %s7
  %s10 = scalar_select 0, %s9, %s7
  $region1: #{tpu_custom_call.1} parent=0
    #allocation3 [shape = 'u8[8192]{0}', space=vmem, size = 0x2000, scoped, tag = 'output window, operand 0, single buffered']
    #allocation4 [shape = 's32[2]{0}', space=sflag, size = 0x8, scoped, tag = 'scoped memory for tpu_custom_call.1']
    %11 = vsyncpa [#allocation4], 0
    loop: start=0, step=1, limit=10
    $region2: #{tpu_custom_call.1} parent=1 // loop_pre_header
      _
    $region3: #{tpu_custom_call.1} parent=1 // loop_header
      %s13 = sphi 0, %s17
      %p14 = scmp.ge.s32.totalorder %s13, 10
      %s20 = sphi 0, %s32
      %s21 = sphi 0, %s28
      %s22 = sphi 0, %s20
      %s23 = sphi 0, %s21
      %s24 = sphi 0, %s22
      %s25 = sphi 0, %s23
      %s35 = sphi 0, %s37
      %s38 = sphi 0, %s35
      %s39 = sphi 0, %s38
      %s55 = sphi 0, %s39
      %s61 = sphi 0, %s63
      %s64 = sphi 0, %s61
      %s65 = sphi 0, %s64
      %s81 = sphi 0, %s65
      %s87 = sphi 0, %s89
      %s90 = sphi 0, %s87
      %s91 = sphi 0, %s90
      %s107 = sphi 0, %s91
      %s113 = sphi 0, %s115
      %s116 = sphi 0, %s113
      %s117 = sphi 0, %s116
      %s133 = sphi 0, %s117
      %s139 = sphi 0, %s141
      %s142 = sphi 0, %s139
      %s143 = sphi 0, %s142
      %s159 = sphi 0, %s143
      %s163 = sphi 0, %s163
      %s165 = sphi 0, %s163
      %s166 = sphi 0, %s165
      %s180 = sphi 0, %s166
      %s186 = sphi 0, %s188
      %s189 = sphi 0, %s186
      %s190 = sphi 0, %s189
      %s206 = sphi 0, %s190
    $region4: #{tpu_custom_call.1} parent=1 // loop_header_branch
      %16 = sbr.rel (%p14) target = $region8
    $region5: #{tpu_custom_call.1} parent=1 // loop_body
      %s18 = ssub.s32 %s13, 1
      %s19 = ssub.s32 %s13, 2
      %s26 = sadd.s32 1, %s21
      %p27 = scmp.ge.s32.totalorder %s26, 8
      %s28 = scalar_select %p27, 0, %s26
      %s29 = sadd.s32 1, %s20
      %s30 = scalar_select %p27, %s29, %s20
      %p31 = scmp.ge.s32.totalorder %s30, 1
      %s32 = scalar_select %p31, 0, %s30
      %s33 = ssub.s32 %s20, %s32
      %p34 = scmp.eq.s32.totalorder %s33, 0
      %s36 = sadd.s32 %s35, 1
      %s37 = scalar_select %p34, %s35, %s36
      %p40 = pneg %p34
      %p41 = scmp.eq.s32.totalorder %s13, 7
      %p42 = por %p40, %p41
      %p43 = scmp.ne.s32.totalorder %s35, %s38
      %p44 = scmp.eq.s32.totalorder %s13, 0
      %p45 = por %p43, %p44
      %p46 = scmp.ne.s32.totalorder %s35, %s38
      %p47 = scmp.eq.s32.totalorder %s18, 7
      %p48 = por %p46, %p47
      %p49 = scmp.ne.s32.totalorder %s38, %s39
      %p50 = scmp.eq.s32.totalorder %s18, 0
      %p51 = por %p49, %p50
      %p52 = scmp.ne.s32.totalorder %s38, %s39
      %p53 = scmp.eq.s32.totalorder %s19, 7
      %p54 = por %p52, %p53
      %p56 = scmp.ne.s32.totalorder %s39, %s55
      %p57 = scmp.eq.s32.totalorder %s19, 0
      %p58 = por %p56, %p57
      %s59 = ssub.s32 %s21, %s28
      %p60 = scmp.eq.s32.totalorder %s59, 0
      %s62 = sadd.s32 %s61, 1
      %s63 = scalar_select %p60, %s61, %s62
      %p66 = pneg %p60
      %p67 = scmp.eq.s32.totalorder %s13, 7
      %p68 = por %p66, %p67
      %p69 = scmp.ne.s32.totalorder %s61, %s64
      %p70 = scmp.eq.s32.totalorder %s13, 0
      %p71 = por %p69, %p70
      %p72 = scmp.ne.s32.totalorder %s61, %s64
      %p73 = scmp.eq.s32.totalorder %s18, 7
      %p74 = por %p72, %p73
      %p75 = scmp.ne.s32.totalorder %s64, %s65
      %p76 = scmp.eq.s32.totalorder %s18, 0
      %p77 = por %p75, %p76
      %p78 = scmp.ne.s32.totalorder %s64, %s65
      %p79 = scmp.eq.s32.totalorder %s19, 7
      %p80 = por %p78, %p79
      %p82 = scmp.ne.s32.totalorder %s65, %s81
      %p83 = scmp.eq.s32.totalorder %s19, 0
      %p84 = por %p82, %p83
      %s85 = ssub.s32 %s21, %s28
      %p86 = scmp.eq.s32.totalorder %s85, 0
      %s88 = sadd.s32 %s87, 1
      %s89 = scalar_select %p86, %s87, %s88
      %p92 = pneg %p86
      %p93 = scmp.eq.s32.totalorder %s13, 7
      %p94 = por %p92, %p93
      %p95 = scmp.ne.s32.totalorder %s87, %s90
      %p96 = scmp.eq.s32.totalorder %s13, 0
      %p97 = por %p95, %p96
      %p98 = scmp.ne.s32.totalorder %s87, %s90
      %p99 = scmp.eq.s32.totalorder %s18, 7
      %p100 = por %p98, %p99
      %p101 = scmp.ne.s32.totalorder %s90, %s91
      %p102 = scmp.eq.s32.totalorder %s18, 0
      %p103 = por %p101, %p102
      %p104 = scmp.ne.s32.totalorder %s90, %s91
      %p105 = scmp.eq.s32.totalorder %s19, 7
      %p106 = por %p104, %p105
      %p108 = scmp.ne.s32.totalorder %s91, %s107
      %p109 = scmp.eq.s32.totalorder %s19, 0
      %p110 = por %p108, %p109
      %s111 = ssub.s32 %s21, %s28
      %p112 = scmp.eq.s32.totalorder %s111, 0
      %s114 = sadd.s32 %s113, 1
      %s115 = scalar_select %p112, %s113, %s114
      %p118 = pneg %p112
      %p119 = scmp.eq.s32.totalorder %s13, 7
      %p120 = por %p118, %p119
      %p121 = scmp.ne.s32.totalorder %s113, %s116
      %p122 = scmp.eq.s32.totalorder %s13, 0
      %p123 = por %p121, %p122
      %p124 = scmp.ne.s32.totalorder %s113, %s116
      %p125 = scmp.eq.s32.totalorder %s18, 7
      %p126 = por %p124, %p125
      %p127 = scmp.ne.s32.totalorder %s116, %s117
      %p128 = scmp.eq.s32.totalorder %s18, 0
      %p129 = por %p127, %p128
      %p130 = scmp.ne.s32.totalorder %s116, %s117
      %p131 = scmp.eq.s32.totalorder %s19, 7
      %p132 = por %p130, %p131
      %p134 = scmp.ne.s32.totalorder %s117, %s133
      %p135 = scmp.eq.s32.totalorder %s19, 0
      %p136 = por %p134, %p135
      %s137 = ssub.s32 %s21, %s28
      %p138 = scmp.eq.s32.totalorder %s137, 0
      %s140 = sadd.s32 %s139, 1
      %s141 = scalar_select %p138, %s139, %s140
      %p144 = pneg %p138
      %p145 = scmp.eq.s32.totalorder %s13, 7
      %p146 = por %p144, %p145
      %p147 = scmp.ne.s32.totalorder %s139, %s142
      %p148 = scmp.eq.s32.totalorder %s13, 0
      %p149 = por %p147, %p148
      %p150 = scmp.ne.s32.totalorder %s139, %s142
      %p151 = scmp.eq.s32.totalorder %s18, 7
      %p152 = por %p150, %p151
      %p153 = scmp.ne.s32.totalorder %s142, %s143
      %p154 = scmp.eq.s32.totalorder %s18, 0
      %p155 = por %p153, %p154
      %p156 = scmp.ne.s32.totalorder %s142, %s143
      %p157 = scmp.eq.s32.totalorder %s19, 7
      %p158 = por %p156, %p157
      %p160 = scmp.ne.s32.totalorder %s143, %s159
      %p161 = scmp.eq.s32.totalorder %s19, 0
      %p162 = por %p160, %p161
      %s164 = sadd.s32 %s163, 1
      %p167 = scmp.eq.s32.totalorder %s13, 7
      %p168 = scmp.ne.s32.totalorder %s163, %s165
      %p169 = scmp.eq.s32.totalorder %s13, 0
      %p170 = por %p168, %p169
      %p171 = scmp.ne.s32.totalorder %s163, %s165
      %p172 = scmp.eq.s32.totalorder %s18, 7
      %p173 = por %p171, %p172
      %p174 = scmp.ne.s32.totalorder %s165, %s166
      %p175 = scmp.eq.s32.totalorder %s18, 0
      %p176 = por %p174, %p175
      %p177 = scmp.ne.s32.totalorder %s165, %s166
      %p178 = scmp.eq.s32.totalorder %s19, 7
      %p179 = por %p177, %p178
      %p181 = scmp.ne.s32.totalorder %s166, %s180
      %p182 = scmp.eq.s32.totalorder %s19, 0
      %p183 = por %p181, %p182
      %s184 = ssub.s32 %s20, %s32
      %p185 = scmp.eq.s32.totalorder %s184, 0
      %s187 = sadd.s32 %s186, 1
      %s188 = scalar_select %p185, %s186, %s187
      %p191 = pneg %p185
      %p192 = scmp.eq.s32.totalorder %s13, 7
      %p193 = por %p191, %p192
      %p194 = scmp.ne.s32.totalorder %s186, %s189
      %p195 = scmp.eq.s32.totalorder %s13, 0
      %p196 = por %p194, %p195
      %p197 = scmp.ne.s32.totalorder %s186, %s189
      %p198 = scmp.eq.s32.totalorder %s18, 7
      %p199 = por %p197, %p198
      %p200 = scmp.ne.s32.totalorder %s189, %s190
      %p201 = scmp.eq.s32.totalorder %s18, 0
      %p202 = por %p200, %p201
      %p203 = scmp.ne.s32.totalorder %s189, %s190
      %p204 = scmp.eq.s32.totalorder %s19, 7
      %p205 = por %p203, %p204
      %p207 = scmp.ne.s32.totalorder %s190, %s206
      %p208 = scmp.eq.s32.totalorder %s19, 0
      %p209 = por %p207, %p208
      %p210 = scmp.le.s32.totalorder 1, %s13
      %p211 = scmp.lt.s32.totalorder %s13, 9
      %p212 = pnand %p210, %p211
      %p213 = pneg %p212
      // Predicated region
      $region9: #{tpu_custom_call.1} parent=5 // pred_check
        _
      $region10: #{tpu_custom_call.1} parent=5 // pred_check_branch
        %215 = sbr.rel (%p212) target = $region12
      $region11: #{tpu_custom_call.1} parent=5 // pred_region
        %s216 = ssub.s32 %s13, 1
        // Predicated region
        $region13: #{tpu_custom_call.1} parent=11 // pred_check
          %p217 = pneg %p51
        $region14: #{tpu_custom_call.1} parent=11 // pred_check_branch
          %219 = sbr.rel (%p217) target = $region16
        $region15: #{tpu_custom_call.1} parent=11 // pred_region
          %s220 = smul.u32 2, %s22
          %p221 = scmp.lt.s32.totalorder %s220, 1
          %s222 = scalar_select %p221, %s220, 1
          %s223 = smul.addr %s222, 8
          %s224 = scalar_lea.vmem %s0, %s223
          %s225 = smul.u32 2, %s22
        $region16: #{tpu_custom_call.1} parent=11 // pred_fallthru
          _
        // Predicated region
        $region17: #{tpu_custom_call.1} parent=11 // pred_check
          %p226 = pneg %p176
        $region18: #{tpu_custom_call.1} parent=11 // pred_check_branch
          %228 = sbr.rel (%p226) target = $region20
        $region19: #{tpu_custom_call.1} parent=11 // pred_region
          _
        $region20: #{tpu_custom_call.1} parent=11 // pred_fallthru
          _
      $region12: #{tpu_custom_call.1} parent=5 // pred_fallthru
        _
      %p229 = scmp.lt.s32.totalorder %s13, 8
      // Predicated region
      $region21: #{tpu_custom_call.1} parent=5 // pred_check
        %p230 = pneg %p229
      $region22: #{tpu_custom_call.1} parent=5 // pred_check_branch
        %232 = sbr.rel (%p230) target = $region24
      $region23: #{tpu_custom_call.1} parent=5 // pred_region
        // Predicated region
        $region25: #{tpu_custom_call.1} parent=23 // pred_check
          %p233 = pneg %p71
        $region26: #{tpu_custom_call.1} parent=23 // pred_check_branch
          %235 = sbr.rel (%p233) target = $region28
        $region27: #{tpu_custom_call.1} parent=23 // pred_region
          %p236 = scmp.lt.s32.totalorder %s21, 7
          %s237 = scalar_select %p236, %s21, 7
          %s238 = smul.addr %s237, 4
          %s239 = smul.addr %s238, 8
          %s240 = scalar_lea.vmem %s1, %s239
        $region28: #{tpu_custom_call.1} parent=23 // pred_fallthru
          _
        // Predicated region
        $region29: #{tpu_custom_call.1} parent=23 // pred_check
          %p241 = pneg %p97
        $region30: #{tpu_custom_call.1} parent=23 // pred_check_branch
          %243 = sbr.rel (%p241) target = $region32
        $region31: #{tpu_custom_call.1} parent=23 // pred_region
          %p244 = scmp.lt.s32.totalorder %s21, 7
          %s245 = scalar_select %p244, %s21, 7
          %s246 = smul.addr %s245, 4
          %s247 = smul.addr %s246, 8
          %s248 = scalar_lea.vmem %s2, %s247
        $region32: #{tpu_custom_call.1} parent=23 // pred_fallthru
          _
        // Predicated region
        $region33: #{tpu_custom_call.1} parent=23 // pred_check
          %p249 = pneg %p123
        $region34: #{tpu_custom_call.1} parent=23 // pred_check_branch
          %251 = sbr.rel (%p249) target = $region36
        $region35: #{tpu_custom_call.1} parent=23 // pred_region
          %p252 = scmp.lt.s32.totalorder %s21, 7
          %s253 = scalar_select %p252, %s21, 7
          %s254 = smul.addr %s253, 4
          %s255 = smul.addr %s254, 8
          %s256 = scalar_lea.vmem %s3, %s255
        $region36: #{tpu_custom_call.1} parent=23 // pred_fallthru
          _
        // Predicated region
        $region37: #{tpu_custom_call.1} parent=23 // pred_check
          %p257 = pneg %p149
        $region38: #{tpu_custom_call.1} parent=23 // pred_check_branch
          %259 = sbr.rel (%p257) target = $region40
        $region39: #{tpu_custom_call.1} parent=23 // pred_region
          %p260 = scmp.lt.s32.totalorder %s21, 7
          %s261 = scalar_select %p260, %s21, 7
          %s262 = smul.addr %s261, 4
          %s263 = scalar_lea.vmem %s4, %s262
        $region40: #{tpu_custom_call.1} parent=23 // pred_fallthru
          _
      $region24: #{tpu_custom_call.1} parent=5 // pred_fallthru
        _
      %p264 = scmp.le.s32.totalorder 1, %s13
      %p265 = scmp.lt.s32.totalorder %s13, 9
      %p266 = pnand %p264, %p265
      %p267 = pneg %p266
      // Predicated region
      $region41: #{tpu_custom_call.1} parent=5 // pred_check
        _
      $region42: #{tpu_custom_call.1} parent=5 // pred_check_branch
        %269 = sbr.rel (%p266) target = $region44
      $region43: #{tpu_custom_call.1} parent=5 // pred_region
        %s270 = ssub.s32 %s13, 1
        %s271 = smul.u32 2, %s22
        %p272 = scmp.lt.s32.totalorder %s271, 1
        %s273 = scalar_select %p272, %s271, 1
        %s274 = smul.addr %s273, 8
        %s275 = scalar_lea.vmem %s0, %s274
        %p276 = pneg %p51
        %p277 = pneg %p48
        %p278 = scmp.lt.s32.totalorder %s23, 7
        %s279 = scalar_select %p278, %s23, 7
        %s280 = smul.addr %s279, 4
        %s281 = smul.addr %s280, 8
        %s282 = scalar_lea.vmem %s1, %s281
        %p283 = pneg %p77
        %p284 = pneg %p74
        %p285 = scmp.lt.s32.totalorder %s23, 7
        %s286 = scalar_select %p285, %s23, 7
        %s287 = smul.addr %s286, 4
        %s288 = smul.addr %s287, 8
        %s289 = scalar_lea.vmem %s2, %s288
        %p290 = pneg %p103
        %p291 = pneg %p100
        %p292 = scmp.lt.s32.totalorder %s23, 7
        %s293 = scalar_select %p292, %s23, 7
        %s294 = smul.addr %s293, 4
        %s295 = smul.addr %s294, 8
        %s296 = scalar_lea.vmem %s3, %s295
        %p297 = pneg %p129
        %p298 = pneg %p126
        %p299 = scmp.lt.s32.totalorder %s23, 7
        %s300 = scalar_select %p299, %s23, 7
        %s301 = smul.addr %s300, 4
        %s302 = scalar_lea.vmem %s4, %s301
        %p303 = pneg %p155
        %p304 = pneg %p152
        %p305 = pneg %p176
        %p306 = pneg %p173
        %p307 = pneg %p202
        %p308 = pneg %p199
        %s309 = smul.u32 2, %s22
        %p310 = scmp.lt.s32.totalorder %s309, 1
        %s311 = scalar_select %p310, %s309, 1
        %s312 = smul.addr %s311, 8
        %s313 = scalar_lea.vmem %s0, %s312
        %s314 = smul.u32 2, %s22
        %p315 = scmp.lt.s32.totalorder %s23, 7
        %s316 = scalar_select %p315, %s23, 7
        %s317 = smul.addr %s316, 4
        %s318 = smul.addr %s317, 8
        %s319 = scalar_lea.vmem %s1, %s318
        %p320 = scmp.lt.s32.totalorder %s23, 7
        %s321 = scalar_select %p320, %s23, 7
        %s322 = smul.addr %s321, 4
        %s323 = smul.addr %s322, 8
        %s324 = scalar_lea.vmem %s2, %s323
        %p325 = scmp.lt.s32.totalorder %s23, 7
        %s326 = scalar_select %p325, %s23, 7
        %s327 = smul.addr %s326, 4
        %s328 = smul.addr %s327, 8
        %s329 = scalar_lea.vmem %s3, %s328
        %p330 = scmp.lt.s32.totalorder %s23, 7
        %s331 = scalar_select %p330, %s23, 7
        %s332 = smul.addr %s331, 4
        %s333 = scalar_lea.vmem %s4, %s332
        %s334 = smul.u32 2, %s22
        %p335 = scmp.eq.s32.totalorder %s23, 0
        // Predicated region
        $region45: #{tpu_custom_call.1} parent=43 // pred_check
          %p336 = pneg %p335
        $region46: #{tpu_custom_call.1} parent=43 // pred_check_branch
          %338 = sbr.rel (%p336) target = $region48
        $region47: #{tpu_custom_call.1} parent=43 // pred_region
          %v339 = vld [vmem:[%s5] sm:$0x1]
          %v341 = vlaneseq
          %v342 = vshrl.u32 %v341, 7
          %v343 = vsub.s32 0, %v342
          %v344 = vrot.slane %v339, %v343
          %vm346 = vcmask 261120
          %347 = vst.msk [vmem:[#allocation2] sm:$0xff] %vm346, %v344
          %348 = vst.msk [vmem:[#allocation2 + $0x8] sm:$0xff] %vm346, %v344
        $region48: #{tpu_custom_call.1} parent=43 // pred_fallthru
          _
        %v349 = vld [vmem:[%s313] sm:$0xff]
        %v350 = vld [vmem:[%s313 + $0x8] sm:$0xff]
        %v351 = vld [vmem:[%s319] sm:$0xff]
        %v352 = vld [vmem:[%s319 + $0x8] sm:$0xff]
        %v353 = vld [vmem:[%s319 + $0x10] sm:$0xff]
        %v354 = vld [vmem:[%s319 + $0x18] sm:$0xff]
        %vm355 = vcmask 261120
        %v357 = vsel %vm355, %v349, 0
        %v360 = vsel %vm355, %v350, 0
        %362 = vmatprep.subr.mxu0 0.0
        %363 = vmatpush1.msra.mxu0 0.0
        %364 = vmatprep.subr.mxu0 0.0
        %365 = vmatpush1.msra.mxu0 0.0
        %366 = vmatprep.subr.mxu0 0.0
        %367 = vmatpush1.msra.mxu0 0.0
        %368 = vmatprep.subr.mxu0 0.0
        %369 = vmatpush1.msra.mxu0 0.0
        %370 = vmatprep.subr.mxu0 0.0
        %371 = vmatpush1.msra.mxu0 0.0
        %372 = vmatprep.subr.mxu0 0.0
        %373 = vmatpush1.msra.mxu0 0.0
        %374 = vmatprep.subr.mxu0 0.0
        %375 = vmatpush1.msra.mxu0 0.0
        %376 = vmatprep.subr.mxu0 0.0
        %377 = vmatpush1.msra.mxu0 0.0
        %378 = vmatprep.subr.mxu0 0.0
        %379 = vmatpush1.msra.mxu0 0.0
        %380 = vmatprep.subr.mxu0 0.0
        %381 = vmatpush1.msra.mxu0 0.0
        %382 = vmatprep.subr.mxu0 0.0
        %383 = vmatpush1.msra.mxu0 0.0
        %384 = vmatprep.subr.mxu0 0.0
        %385 = vmatpush1.msra.mxu0 0.0
        %386 = vmatprep.subr.mxu0 0.0
        %387 = vmatpush1.msra.mxu0 %v354
        %388 = vmatprep.subr.mxu0 0.0
        %389 = vmatpush1.msra.mxu0 %v353
        %390 = vmatprep.subr.mxu0 0.0
        %391 = vmatpush1.msra.mxu0 %v352
        %392 = vmatprep.subr.mxu0 0.0
        %393 = vmatpush1.msra.mxu0 %v351
        %394 = vmatprep.subr.mxu0 0.0
        %395 = vmatpush2.msra.mxu0 0.0
        %396 = vmatprep.subr.mxu0 0.0
        %397 = vmatpush2.msra.mxu0 0.0
        %398 = vmatprep.subr.mxu0 0.0
        %399 = vmatpush2.msra.mxu0 0.0
        %400 = vmatprep.subr.mxu0 0.0
        %401 = vmatpush2.msra.mxu0 0.0
        %402 = vmatprep.subr.mxu0 0.0
        %403 = vmatpush2.msra.mxu0 0.0
        %404 = vmatprep.subr.mxu0 0.0
        %405 = vmatpush2.msra.mxu0 0.0
        %406 = vmatprep.subr.mxu0 0.0
        %407 = vmatpush2.msra.mxu0 0.0
        %408 = vmatprep.subr.mxu0 0.0
        %409 = vmatpush2.msra.mxu0 0.0
        %410 = vmatprep.subr.mxu0 0.0
        %411 = vmatpush2.msra.mxu0 0.0
        %412 = vmatprep.subr.mxu0 0.0
        %413 = vmatpush2.msra.mxu0 0.0
        %414 = vmatprep.subr.mxu0 0.0
        %415 = vmatpush2.msra.mxu0 0.0
        %416 = vmatprep.subr.mxu0 0.0
        %417 = vmatpush2.msra.mxu0 0.0
        %418 = vmatprep.subr.mxu0 0.0
        %419 = vmatpush2.msra.mxu0 0.0
        %420 = vmatprep.subr.mxu0 0.0
        %421 = vmatpush2.msra.mxu0 0.0
        %422 = vmatprep.subr.mxu0 0.0
        %423 = vmatpush2.msra.mxu0 0.0
        %424 = vmatprep.subr.mxu0 0.0
        %425 = vmatpush2.msra.mxu0 0.0
        %426 = vmatprep.mubr.f32.mxu0 0.0
        %427 = vmatmul.mubr.f32.gmra.mxu0 %v357
        %v428 = vpop.f32.mrf.mxu0
        %v429 = vadd.f32 0.0, %v428
        %v430 = vpop.f32.mrf.mxu0
        %431 = vmatprep.mubr.f32.mxu0 0.0
        %432 = vmatmul.mubr.f32.gmra.mxu0 %v360
        %v433 = vpop.f32.mrf.mxu0
        %v434 = vadd.f32 0.0, %v433
        %v435 = vpop.f32.mrf.mxu0
        %436 = vdwg.mxu0
        %v437 = vld [vmem:[%s324] sm:$0xff]
        %v438 = vld [vmem:[%s324 + $0x8] sm:$0xff]
        %v439 = vld [vmem:[%s324 + $0x10] sm:$0xff]
        %v440 = vld [vmem:[%s324 + $0x18] sm:$0xff]
        %441 = vmatprep.subr.mxu0 0.0
        %442 = vmatpush1.msra.mxu0 0.0
        %443 = vmatprep.subr.mxu0 0.0
        %444 = vmatpush1.msra.mxu0 0.0
        %445 = vmatprep.subr.mxu0 0.0
        %446 = vmatpush1.msra.mxu0 0.0
        %447 = vmatprep.subr.mxu0 0.0
        %448 = vmatpush1.msra.mxu0 0.0
        %449 = vmatprep.subr.mxu0 0.0
        %450 = vmatpush1.msra.mxu0 0.0
        %451 = vmatprep.subr.mxu0 0.0
        %452 = vmatpush1.msra.mxu0 0.0
        %453 = vmatprep.subr.mxu0 0.0
        %454 = vmatpush1.msra.mxu0 0.0
        %455 = vmatprep.subr.mxu0 0.0
        %456 = vmatpush1.msra.mxu0 0.0
        %457 = vmatprep.subr.mxu0 0.0
        %458 = vmatpush1.msra.mxu0 0.0
        %459 = vmatprep.subr.mxu0 0.0
        %460 = vmatpush1.msra.mxu0 0.0
        %461 = vmatprep.subr.mxu0 0.0
        %462 = vmatpush1.msra.mxu0 0.0
        %463 = vmatprep.subr.mxu0 0.0
        %464 = vmatpush1.msra.mxu0 0.0
        %465 = vmatprep.subr.mxu0 0.0
        %466 = vmatpush1.msra.mxu0 %v440
        %467 = vmatprep.subr.mxu0 0.0
        %468 = vmatpush1.msra.mxu0 %v439
        %469 = vmatprep.subr.mxu0 0.0
        %470 = vmatpush1.msra.mxu0 %v438
        %471 = vmatprep.subr.mxu0 0.0
        %472 = vmatpush1.msra.mxu0 %v437
        %473 = vmatprep.subr.mxu0 0.0
        %474 = vmatpush2.msra.mxu0 0.0
        %475 = vmatprep.subr.mxu0 0.0
        %476 = vmatpush2.msra.mxu0 0.0
        %477 = vmatprep.subr.mxu0 0.0
        %478 = vmatpush2.msra.mxu0 0.0
        %479 = vmatprep.subr.mxu0 0.0
        %480 = vmatpush2.msra.mxu0 0.0
        %481 = vmatprep.subr.mxu0 0.0
        %482 = vmatpush2.msra.mxu0 0.0
        %483 = vmatprep.subr.mxu0 0.0
        %484 = vmatpush2.msra.mxu0 0.0
        %485 = vmatprep.subr.mxu0 0.0
        %486 = vmatpush2.msra.mxu0 0.0
        %487 = vmatprep.subr.mxu0 0.0
        %488 = vmatpush2.msra.mxu0 0.0
        %489 = vmatprep.subr.mxu0 0.0
        %490 = vmatpush2.msra.mxu0 0.0
        %491 = vmatprep.subr.mxu0 0.0
        %492 = vmatpush2.msra.mxu0 0.0
        %493 = vmatprep.subr.mxu0 0.0
        %494 = vmatpush2.msra.mxu0 0.0
        %495 = vmatprep.subr.mxu0 0.0
        %496 = vmatpush2.msra.mxu0 0.0
        %497 = vmatprep.subr.mxu0 0.0
        %498 = vmatpush2.msra.mxu0 0.0
        %499 = vmatprep.subr.mxu0 0.0
        %500 = vmatpush2.msra.mxu0 0.0
        %501 = vmatprep.subr.mxu0 0.0
        %502 = vmatpush2.msra.mxu0 0.0
        %503 = vmatprep.subr.mxu0 0.0
        %504 = vmatpush2.msra.mxu0 0.0
        %505 = vmatprep.mubr.f32.mxu0 0.0
        %506 = vmatmul.mubr.f32.gmra.mxu0 %v357
        %v507 = vpop.f32.mrf.mxu0
        %v508 = vadd.f32 0.0, %v507
        %v509 = vpop.f32.mrf.mxu0
        %510 = vmatprep.mubr.f32.mxu0 0.0
        %511 = vmatmul.mubr.f32.gmra.mxu0 %v360
        %v512 = vpop.f32.mrf.mxu0
        %v513 = vadd.f32 0.0, %v512
        %v514 = vpop.f32.mrf.mxu0
        %515 = vdwg.mxu0
        %v516 = vld [vmem:[%s329] sm:$0xff]
        %v517 = vld [vmem:[%s329 + $0x8] sm:$0xff]
        %v518 = vld [vmem:[%s329 + $0x10] sm:$0xff]
        %v519 = vld [vmem:[%s329 + $0x18] sm:$0xff]
        %520 = vmatprep.subr.mxu0 0.0
        %521 = vmatpush1.msra.mxu0 0.0
        %522 = vmatprep.subr.mxu0 0.0
        %523 = vmatpush1.msra.mxu0 0.0
        %524 = vmatprep.subr.mxu0 0.0
        %525 = vmatpush1.msra.mxu0 0.0
        %526 = vmatprep.subr.mxu0 0.0
        %527 = vmatpush1.msra.mxu0 0.0
        %528 = vmatprep.subr.mxu0 0.0
        %529 = vmatpush1.msra.mxu0 0.0
        %530 = vmatprep.subr.mxu0 0.0
        %531 = vmatpush1.msra.mxu0 0.0
        %532 = vmatprep.subr.mxu0 0.0
        %533 = vmatpush1.msra.mxu0 0.0
        %534 = vmatprep.subr.mxu0 0.0
        %535 = vmatpush1.msra.mxu0 0.0
        %536 = vmatprep.subr.mxu0 0.0
        %537 = vmatpush1.msra.mxu0 0.0
        %538 = vmatprep.subr.mxu0 0.0
        %539 = vmatpush1.msra.mxu0 0.0
        %540 = vmatprep.subr.mxu0 0.0
        %541 = vmatpush1.msra.mxu0 0.0
        %542 = vmatprep.subr.mxu0 0.0
        %543 = vmatpush1.msra.mxu0 0.0
        %544 = vmatprep.subr.mxu0 0.0
        %545 = vmatpush1.msra.mxu0 %v519
        %546 = vmatprep.subr.mxu0 0.0
        %547 = vmatpush1.msra.mxu0 %v518
        %548 = vmatprep.subr.mxu0 0.0
        %549 = vmatpush1.msra.mxu0 %v517
        %550 = vmatprep.subr.mxu0 0.0
        %551 = vmatpush1.msra.mxu0 %v516
        %552 = vmatprep.subr.mxu0 0.0
        %553 = vmatpush2.msra.mxu0 0.0
        %554 = vmatprep.subr.mxu0 0.0
        %555 = vmatpush2.msra.mxu0 0.0
        %556 = vmatprep.subr.mxu0 0.0
        %557 = vmatpush2.msra.mxu0 0.0
        %558 = vmatprep.subr.mxu0 0.0
        %559 = vmatpush2.msra.mxu0 0.0
        %560 = vmatprep.subr.mxu0 0.0
        %561 = vmatpush2.msra.mxu0 0.0
        %562 = vmatprep.subr.mxu0 0.0
        %563 = vmatpush2.msra.mxu0 0.0
        %564 = vmatprep.subr.mxu0 0.0
        %565 = vmatpush2.msra.mxu0 0.0
        %566 = vmatprep.subr.mxu0 0.0
        %567 = vmatpush2.msra.mxu0 0.0
        %568 = vmatprep.subr.mxu0 0.0
        %569 = vmatpush2.msra.mxu0 0.0
        %570 = vmatprep.subr.mxu0 0.0
        %571 = vmatpush2.msra.mxu0 0.0
        %572 = vmatprep.subr.mxu0 0.0
        %573 = vmatpush2.msra.mxu0 0.0
        %574 = vmatprep.subr.mxu0 0.0
        %575 = vmatpush2.msra.mxu0 0.0
        %576 = vmatprep.subr.mxu0 0.0
        %577 = vmatpush2.msra.mxu0 0.0
        %578 = vmatprep.subr.mxu0 0.0
        %579 = vmatpush2.msra.mxu0 0.0
        %580 = vmatprep.subr.mxu0 0.0
        %581 = vmatpush2.msra.mxu0 0.0
        %582 = vmatprep.subr.mxu0 0.0
        %583 = vmatpush2.msra.mxu0 0.0
        %584 = vmatprep.mubr.f32.mxu0 0.0
        %585 = vmatmul.mubr.f32.gmra.mxu0 %v357
        %v586 = vpop.f32.mrf.mxu0
        %v587 = vadd.f32 0.0, %v586
        %v588 = vpop.f32.mrf.mxu0
        %589 = vmatprep.mubr.f32.mxu0 0.0
        %590 = vmatmul.mubr.f32.gmra.mxu0 %v360
        %v591 = vpop.f32.mrf.mxu0
        %v592 = vadd.f32 0.0, %v591
        %v593 = vpop.f32.mrf.mxu0
        %594 = vdwg.mxu0
        %vm595 = vcmask 31744
        %v597 = vsel %vm595, %v429, 0
        %v600 = vsel %vm595, %v508, 0
        %602 = vmatprep.subr.mxu0 0.0
        %603 = vmatpush1.xpose.msra.mxu0 0.0
        %604 = vmatprep.subr.mxu0 0.0
        %605 = vmatpush1.xpose.msra.mxu0 0.0
        %606 = vmatprep.subr.mxu0 0.0
        %607 = vmatpush1.xpose.msra.mxu0 0.0
        %608 = vmatprep.subr.mxu0 0.0
        %609 = vmatpush1.xpose.msra.mxu0 0.0
        %610 = vmatprep.subr.mxu0 0.0
        %611 = vmatpush1.xpose.msra.mxu0 0.0
        %612 = vmatprep.subr.mxu0 0.0
        %613 = vmatpush1.xpose.msra.mxu0 0.0
        %614 = vmatprep.subr.mxu0 0.0
        %615 = vmatpush1.xpose.msra.mxu0 0.0
        %616 = vmatprep.subr.mxu0 0.0
        %617 = vmatpush1.xpose.msra.mxu0 0.0
        %618 = vmatprep.subr.mxu0 0.0
        %619 = vmatpush1.xpose.msra.mxu0 0.0
        %620 = vmatprep.subr.mxu0 0.0
        %621 = vmatpush1.xpose.msra.mxu0 0.0
        %622 = vmatprep.subr.mxu0 0.0
        %623 = vmatpush1.xpose.msra.mxu0 0.0
        %624 = vmatprep.subr.mxu0 0.0
        %625 = vmatpush1.xpose.msra.mxu0 0.0
        %626 = vmatprep.subr.mxu0 0.0
        %627 = vmatpush1.xpose.msra.mxu0 0.0
        %628 = vmatprep.subr.mxu0 0.0
        %629 = vmatpush1.xpose.msra.mxu0 0.0
        %630 = vmatprep.subr.mxu0 0.0
        %631 = vmatpush1.xpose.msra.mxu0 0.0
        %632 = vmatprep.subr.mxu0 0.0
        %633 = vmatpush1.xpose.msra.mxu0 %v600
        %634 = vmatprep.subr.mxu0 0.0
        %635 = vmatpush2.xpose.msra.mxu0 0.0
        %636 = vmatprep.subr.mxu0 0.0
        %637 = vmatpush2.xpose.msra.mxu0 0.0
        %638 = vmatprep.subr.mxu0 0.0
        %639 = vmatpush2.xpose.msra.mxu0 0.0
        %640 = vmatprep.subr.mxu0 0.0
        %641 = vmatpush2.xpose.msra.mxu0 0.0
        %642 = vmatprep.subr.mxu0 0.0
        %643 = vmatpush2.xpose.msra.mxu0 0.0
        %644 = vmatprep.subr.mxu0 0.0
        %645 = vmatpush2.xpose.msra.mxu0 0.0
        %646 = vmatprep.subr.mxu0 0.0
        %647 = vmatpush2.xpose.msra.mxu0 0.0
        %648 = vmatprep.subr.mxu0 0.0
        %649 = vmatpush2.xpose.msra.mxu0 0.0
        %650 = vmatprep.subr.mxu0 0.0
        %651 = vmatpush2.xpose.msra.mxu0 0.0
        %652 = vmatprep.subr.mxu0 0.0
        %653 = vmatpush2.xpose.msra.mxu0 0.0
        %654 = vmatprep.subr.mxu0 0.0
        %655 = vmatpush2.xpose.msra.mxu0 0.0
        %656 = vmatprep.subr.mxu0 0.0
        %657 = vmatpush2.xpose.msra.mxu0 0.0
        %658 = vmatprep.subr.mxu0 0.0
        %659 = vmatpush2.xpose.msra.mxu0 0.0
        %660 = vmatprep.subr.mxu0 0.0
        %661 = vmatpush2.xpose.msra.mxu0 0.0
        %662 = vmatprep.subr.mxu0 0.0
        %663 = vmatpush2.xpose.msra.mxu0 0.0
        %664 = vmatprep.subr.mxu0 0.0
        %665 = vmatpush2.xpose.msra.mxu0 0.0
        %666 = vmatprep.mubr.f32.mxu0 0.0
        %667 = vmatmul.mubr.f32.gmra.mxu0 %v597
        %v668 = vpop.f32.mrf.mxu0
        %v669 = vadd.f32 0.0, %v668
        %v670 = vpop.f32.mrf.mxu0
        %671 = vdwg.mxu0
        %v673 = vsel %vm595, %v434, 0
        %v676 = vsel %vm595, %v513, 0
        %678 = vmatprep.subr.mxu0 0.0
        %679 = vmatpush1.xpose.msra.mxu0 0.0
        %680 = vmatprep.subr.mxu0 0.0
        %681 = vmatpush1.xpose.msra.mxu0 0.0
        %682 = vmatprep.subr.mxu0 0.0
        %683 = vmatpush1.xpose.msra.mxu0 0.0
        %684 = vmatprep.subr.mxu0 0.0
        %685 = vmatpush1.xpose.msra.mxu0 0.0
        %686 = vmatprep.subr.mxu0 0.0
        %687 = vmatpush1.xpose.msra.mxu0 0.0
        %688 = vmatprep.subr.mxu0 0.0
        %689 = vmatpush1.xpose.msra.mxu0 0.0
        %690 = vmatprep.subr.mxu0 0.0
        %691 = vmatpush1.xpose.msra.mxu0 0.0
        %692 = vmatprep.subr.mxu0 0.0
        %693 = vmatpush1.xpose.msra.mxu0 0.0
        %694 = vmatprep.subr.mxu0 0.0
        %695 = vmatpush1.xpose.msra.mxu0 0.0
        %696 = vmatprep.subr.mxu0 0.0
        %697 = vmatpush1.xpose.msra.mxu0 0.0
        %698 = vmatprep.subr.mxu0 0.0
        %699 = vmatpush1.xpose.msra.mxu0 0.0
        %700 = vmatprep.subr.mxu0 0.0
        %701 = vmatpush1.xpose.msra.mxu0 0.0
        %702 = vmatprep.subr.mxu0 0.0
        %703 = vmatpush1.xpose.msra.mxu0 0.0
        %704 = vmatprep.subr.mxu0 0.0
        %705 = vmatpush1.xpose.msra.mxu0 0.0
        %706 = vmatprep.subr.mxu0 0.0
        %707 = vmatpush1.xpose.msra.mxu0 0.0
        %708 = vmatprep.subr.mxu0 0.0
        %709 = vmatpush1.xpose.msra.mxu0 %v676
        %710 = vmatprep.subr.mxu0 0.0
        %711 = vmatpush2.xpose.msra.mxu0 0.0
        %712 = vmatprep.subr.mxu0 0.0
        %713 = vmatpush2.xpose.msra.mxu0 0.0
        %714 = vmatprep.subr.mxu0 0.0
        %715 = vmatpush2.xpose.msra.mxu0 0.0
        %716 = vmatprep.subr.mxu0 0.0
        %717 = vmatpush2.xpose.msra.mxu0 0.0
        %718 = vmatprep.subr.mxu0 0.0
        %719 = vmatpush2.xpose.msra.mxu0 0.0
        %720 = vmatprep.subr.mxu0 0.0
        %721 = vmatpush2.xpose.msra.mxu0 0.0
        %722 = vmatprep.subr.mxu0 0.0
        %723 = vmatpush2.xpose.msra.mxu0 0.0
        %724 = vmatprep.subr.mxu0 0.0
        %725 = vmatpush2.xpose.msra.mxu0 0.0
        %726 = vmatprep.subr.mxu0 0.0
        %727 = vmatpush2.xpose.msra.mxu0 0.0
        %728 = vmatprep.subr.mxu0 0.0
        %729 = vmatpush2.xpose.msra.mxu0 0.0
        %730 = vmatprep.subr.mxu0 0.0
        %731 = vmatpush2.xpose.msra.mxu0 0.0
        %732 = vmatprep.subr.mxu0 0.0
        %733 = vmatpush2.xpose.msra.mxu0 0.0
        %734 = vmatprep.subr.mxu0 0.0
        %735 = vmatpush2.xpose.msra.mxu0 0.0
        %736 = vmatprep.subr.mxu0 0.0
        %737 = vmatpush2.xpose.msra.mxu0 0.0
        %738 = vmatprep.subr.mxu0 0.0
        %739 = vmatpush2.xpose.msra.mxu0 0.0
        %740 = vmatprep.subr.mxu0 0.0
        %741 = vmatpush2.xpose.msra.mxu0 0.0
        %742 = vmatprep.mubr.f32.mxu0 0.0
        %743 = vmatmul.mubr.f32.gmra.mxu0 %v673
        %v744 = vpop.f32.mrf.mxu0
        %v745 = vadd.f32 0.0, %v744
        %v746 = vpop.f32.mrf.mxu0
        %747 = vdwg.mxu0
        %vm748 = vcmask 64512
        %v749 = vsel %vm748, %v669, -inf
        %750 = vmax.xlane.f32.xlu0 %v749
        %v751 = vpop.xlane.xlu0 %750
        %v752 = vsel %vm748, %v745, -inf
        %753 = vmax.xlane.f32.xlu0 %v752
        %v754 = vpop.xlane.xlu0 %753
        %v755 = vsub.f32 %v669, %v751
        %v756 = vsub.f32 %v745, %v754
        %v757 = vmul.f32 %v755, 1.442695
        %v758 = vpow.pop %v757
        %v759 = vmul.f32 %v756, 1.442695
        %v760 = vpow.pop %v759
        %v761 = vsel %vm748, %v758, 0.0
        %762 = vadd.xlane.f32.xlu0 %v761
        %v763 = vpop.xlane.xlu0 %762
        %v764 = vsel %vm748, %v760, 0.0
        %765 = vadd.xlane.f32.xlu0 %v764
        %v766 = vpop.xlane.xlu0 %765
        %v768 = vsel %vm748, %v758, 0
        %770 = vmatprep.subr.mxu0 0.0
        %771 = vmatpush1.msra.mxu0 0.0
        %772 = vmatprep.subr.mxu0 0.0
        %773 = vmatpush1.msra.mxu0 0.0
        %774 = vmatprep.subr.mxu0 0.0
        %775 = vmatpush1.msra.mxu0 0.0
        %776 = vmatprep.subr.mxu0 0.0
        %777 = vmatpush1.msra.mxu0 0.0
        %778 = vmatprep.subr.mxu0 0.0
        %779 = vmatpush1.msra.mxu0 0.0
        %780 = vmatprep.subr.mxu0 0.0
        %781 = vmatpush1.msra.mxu0 0.0
        %782 = vmatprep.subr.mxu0 0.0
        %783 = vmatpush1.msra.mxu0 0.0
        %784 = vmatprep.subr.mxu0 0.0
        %785 = vmatpush1.msra.mxu0 0.0
        %786 = vmatprep.subr.mxu0 0.0
        %787 = vmatpush1.msra.mxu0 0.0
        %788 = vmatprep.subr.mxu0 0.0
        %789 = vmatpush1.msra.mxu0 0.0
        %790 = vmatprep.subr.mxu0 0.0
        %791 = vmatpush1.msra.mxu0 0.0
        %792 = vmatprep.subr.mxu0 0.0
        %793 = vmatpush1.msra.mxu0 0.0
        %794 = vmatprep.subr.mxu0 0.0
        %795 = vmatpush1.msra.mxu0 0.0
        %796 = vmatprep.subr.mxu0 0.0
        %797 = vmatpush1.msra.mxu0 0.0
        %798 = vmatprep.subr.mxu0 0.0
        %799 = vmatpush1.msra.mxu0 0.0
        %800 = vmatprep.subr.mxu0 0.0
        %801 = vmatpush1.msra.mxu0 %v587
        %802 = vmatprep.subr.mxu0 0.0
        %803 = vmatpush2.msra.mxu0 0.0
        %804 = vmatprep.subr.mxu0 0.0
        %805 = vmatpush2.msra.mxu0 0.0
        %806 = vmatprep.subr.mxu0 0.0
        %807 = vmatpush2.msra.mxu0 0.0
        %808 = vmatprep.subr.mxu0 0.0
        %809 = vmatpush2.msra.mxu0 0.0
        %810 = vmatprep.subr.mxu0 0.0
        %811 = vmatpush2.msra.mxu0 0.0
        %812 = vmatprep.subr.mxu0 0.0
        %813 = vmatpush2.msra.mxu0 0.0
        %814 = vmatprep.subr.mxu0 0.0
        %815 = vmatpush2.msra.mxu0 0.0
        %816 = vmatprep.subr.mxu0 0.0
        %817 = vmatpush2.msra.mxu0 0.0
        %818 = vmatprep.subr.mxu0 0.0
        %819 = vmatpush2.msra.mxu0 0.0
        %820 = vmatprep.subr.mxu0 0.0
        %821 = vmatpush2.msra.mxu0 0.0
        %822 = vmatprep.subr.mxu0 0.0
        %823 = vmatpush2.msra.mxu0 0.0
        %824 = vmatprep.subr.mxu0 0.0
        %825 = vmatpush2.msra.mxu0 0.0
        %826 = vmatprep.subr.mxu0 0.0
        %827 = vmatpush2.msra.mxu0 0.0
        %828 = vmatprep.subr.mxu0 0.0
        %829 = vmatpush2.msra.mxu0 0.0
        %830 = vmatprep.subr.mxu0 0.0
        %831 = vmatpush2.msra.mxu0 0.0
        %832 = vmatprep.subr.mxu0 0.0
        %833 = vmatpush2.msra.mxu0 0.0
        %834 = vmatprep.mubr.f32.mxu0 0.0
        %835 = vmatmul.mubr.f32.gmra.mxu0 %v768
        %v836 = vpop.f32.mrf.mxu0
        %v837 = vadd.f32 0.0, %v836
        %v838 = vpop.f32.mrf.mxu0
        %839 = vdwg.mxu0
        %v841 = vsel %vm748, %v760, 0
        %843 = vmatprep.subr.mxu0 0.0
        %844 = vmatpush1.msra.mxu0 0.0
        %845 = vmatprep.subr.mxu0 0.0
        %846 = vmatpush1.msra.mxu0 0.0
        %847 = vmatprep.subr.mxu0 0.0
        %848 = vmatpush1.msra.mxu0 0.0
        %849 = vmatprep.subr.mxu0 0.0
        %850 = vmatpush1.msra.mxu0 0.0
        %851 = vmatprep.subr.mxu0 0.0
        %852 = vmatpush1.msra.mxu0 0.0
        %853 = vmatprep.subr.mxu0 0.0
        %854 = vmatpush1.msra.mxu0 0.0
        %855 = vmatprep.subr.mxu0 0.0
        %856 = vmatpush1.msra.mxu0 0.0
        %857 = vmatprep.subr.mxu0 0.0
        %858 = vmatpush1.msra.mxu0 0.0
        %859 = vmatprep.subr.mxu0 0.0
        %860 = vmatpush1.msra.mxu0 0.0
        %861 = vmatprep.subr.mxu0 0.0
        %862 = vmatpush1.msra.mxu0 0.0
        %863 = vmatprep.subr.mxu0 0.0
        %864 = vmatpush1.msra.mxu0 0.0
        %865 = vmatprep.subr.mxu0 0.0
        %866 = vmatpush1.msra.mxu0 0.0
        %867 = vmatprep.subr.mxu0 0.0
        %868 = vmatpush1.msra.mxu0 0.0
        %869 = vmatprep.subr.mxu0 0.0
        %870 = vmatpush1.msra.mxu0 0.0
        %871 = vmatprep.subr.mxu0 0.0
        %872 = vmatpush1.msra.mxu0 0.0
        %873 = vmatprep.subr.mxu0 0.0
        %874 = vmatpush1.msra.mxu0 %v592
        %875 = vmatprep.subr.mxu0 0.0
        %876 = vmatpush2.msra.mxu0 0.0
        %877 = vmatprep.subr.mxu0 0.0
        %878 = vmatpush2.msra.mxu0 0.0
        %879 = vmatprep.subr.mxu0 0.0
        %880 = vmatpush2.msra.mxu0 0.0
        %881 = vmatprep.subr.mxu0 0.0
        %882 = vmatpush2.msra.mxu0 0.0
        %883 = vmatprep.subr.mxu0 0.0
        %884 = vmatpush2.msra.mxu0 0.0
        %885 = vmatprep.subr.mxu0 0.0
        %886 = vmatpush2.msra.mxu0 0.0
        %887 = vmatprep.subr.mxu0 0.0
        %888 = vmatpush2.msra.mxu0 0.0
        %889 = vmatprep.subr.mxu0 0.0
        %890 = vmatpush2.msra.mxu0 0.0
        %891 = vmatprep.subr.mxu0 0.0
        %892 = vmatpush2.msra.mxu0 0.0
        %893 = vmatprep.subr.mxu0 0.0
        %894 = vmatpush2.msra.mxu0 0.0
        %895 = vmatprep.subr.mxu0 0.0
        %896 = vmatpush2.msra.mxu0 0.0
        %897 = vmatprep.subr.mxu0 0.0
        %898 = vmatpush2.msra.mxu0 0.0
        %899 = vmatprep.subr.mxu0 0.0
        %900 = vmatpush2.msra.mxu0 0.0
        %901 = vmatprep.subr.mxu0 0.0
        %902 = vmatpush2.msra.mxu0 0.0
        %903 = vmatprep.subr.mxu0 0.0
        %904 = vmatpush2.msra.mxu0 0.0
        %905 = vmatprep.subr.mxu0 0.0
        %906 = vmatpush2.msra.mxu0 0.0
        %907 = vmatprep.mubr.f32.mxu0 0.0
        %908 = vmatmul.mubr.f32.gmra.mxu0 %v841
        %v909 = vpop.f32.mrf.mxu0
        %v910 = vadd.f32 0.0, %v909
        %v911 = vpop.f32.mrf.mxu0
        %912 = vdwg.mxu0
        %v913 = vrcp.pop %v763
        %v914 = vmul.f32 %v837, %v913
        %v915 = vrcp.pop %v766
        %v916 = vmul.f32 %v910, %v915
        %v917 = vld [vmem:[#allocation2] sm:$0xff]
        %v918 = vld [vmem:[#allocation2 + $0x8] sm:$0xff]
        %v919 = vld [vmem:[%s333] sm:$0xf]
        %v921 = vsel %vm595, %v914, 0
        %v924 = vsel %vm595, %v916, 0
        %vm926 = vcmask 1043456
        %v928 = vsel %vm926, %v919, 0
        %930 = vmatprep.subr.mxu0 0.0
        %931 = vmatpush1.msra.mxu0 0.0
        %932 = vmatprep.subr.mxu0 0.0
        %933 = vmatpush1.msra.mxu0 0.0
        %934 = vmatprep.subr.mxu0 0.0
        %935 = vmatpush1.msra.mxu0 0.0
        %936 = vmatprep.subr.mxu0 0.0
        %937 = vmatpush1.msra.mxu0 0.0
        %938 = vmatprep.subr.mxu0 0.0
        %939 = vmatpush1.msra.mxu0 0.0
        %940 = vmatprep.subr.mxu0 0.0
        %941 = vmatpush1.msra.mxu0 0.0
        %942 = vmatprep.subr.mxu0 0.0
        %943 = vmatpush1.msra.mxu0 0.0
        %944 = vmatprep.subr.mxu0 0.0
        %945 = vmatpush1.msra.mxu0 0.0
        %946 = vmatprep.subr.mxu0 0.0
        %947 = vmatpush1.msra.mxu0 0.0
        %948 = vmatprep.subr.mxu0 0.0
        %949 = vmatpush1.msra.mxu0 0.0
        %950 = vmatprep.subr.mxu0 0.0
        %951 = vmatpush1.msra.mxu0 0.0
        %952 = vmatprep.subr.mxu0 0.0
        %953 = vmatpush1.msra.mxu0 0.0
        %954 = vmatprep.subr.mxu0 0.0
        %955 = vmatpush1.msra.mxu0 0.0
        %956 = vmatprep.subr.mxu0 0.0
        %957 = vmatpush1.msra.mxu0 0.0
        %958 = vmatprep.subr.mxu0 0.0
        %959 = vmatpush1.msra.mxu0 0.0
        %960 = vmatprep.subr.mxu0 0.0
        %961 = vmatpush1.msra.mxu0 %v928
        %962 = vmatprep.subr.mxu0 0.0
        %963 = vmatpush2.msra.mxu0 0.0
        %964 = vmatprep.subr.mxu0 0.0
        %965 = vmatpush2.msra.mxu0 0.0
        %966 = vmatprep.subr.mxu0 0.0
        %967 = vmatpush2.msra.mxu0 0.0
        %968 = vmatprep.subr.mxu0 0.0
        %969 = vmatpush2.msra.mxu0 0.0
        %970 = vmatprep.subr.mxu0 0.0
        %971 = vmatpush2.msra.mxu0 0.0
        %972 = vmatprep.subr.mxu0 0.0
        %973 = vmatpush2.msra.mxu0 0.0
        %974 = vmatprep.subr.mxu0 0.0
        %975 = vmatpush2.msra.mxu0 0.0
        %976 = vmatprep.subr.mxu0 0.0
        %977 = vmatpush2.msra.mxu0 0.0
        %978 = vmatprep.subr.mxu0 0.0
        %979 = vmatpush2.msra.mxu0 0.0
        %980 = vmatprep.subr.mxu0 0.0
        %981 = vmatpush2.msra.mxu0 0.0
        %982 = vmatprep.subr.mxu0 0.0
        %983 = vmatpush2.msra.mxu0 0.0
        %984 = vmatprep.subr.mxu0 0.0
        %985 = vmatpush2.msra.mxu0 0.0
        %986 = vmatprep.subr.mxu0 0.0
        %987 = vmatpush2.msra.mxu0 0.0
        %988 = vmatprep.subr.mxu0 0.0
        %989 = vmatpush2.msra.mxu0 0.0
        %990 = vmatprep.subr.mxu0 0.0
        %991 = vmatpush2.msra.mxu0 0.0
        %992 = vmatprep.subr.mxu0 0.0
        %993 = vmatpush2.msra.mxu0 0.0
        %994 = vmatprep.mubr.f32.mxu0 0.0
        %995 = vmatmul.mubr.f32.gmra.mxu0 %v921
        %v996 = vpop.f32.mrf.mxu0
        %v997 = vadd.f32 0.0, %v996
        %v998 = vpop.f32.mrf.mxu0
        %999 = vmatprep.mubr.f32.mxu0 0.0
        %1000 = vmatmul.mubr.f32.gmra.mxu0 %v924
        %v1001 = vpop.f32.mrf.mxu0
        %v1002 = vadd.f32 0.0, %v1001
        %v1003 = vpop.f32.mrf.mxu0
        %1004 = vdwg.mxu0
        %v1005 = vadd.f32 %v917, %v997
        %v1006 = vadd.f32 %v918, %v1002
        %1007 = vst.msk [vmem:[#allocation2] sm:$0xff] %vm355, %v1005
        %1008 = vst.msk [vmem:[#allocation2 + $0x8] sm:$0xff] %vm355, %v1006
        %p1009 = scmp.eq.s32.totalorder %s23, 7
        // Predicated region
        $region49: #{tpu_custom_call.1} parent=43 // pred_check
          %p1010 = pneg %p1009
        $region50: #{tpu_custom_call.1} parent=43 // pred_check_branch
          %1012 = sbr.rel (%p1010) target = $region52
        $region51: #{tpu_custom_call.1} parent=43 // pred_region
          %v1013 = vld [vmem:[#allocation2] sm:$0xff]
          %v1014 = vld [vmem:[#allocation2 + $0x8] sm:$0xff]
          %1015 = vst.msk [vmem:[#allocation3] sm:$0xff] %vm355, %v1013
          %1016 = vst.msk [vmem:[#allocation3 + $0x8] sm:$0xff] %vm355, %v1014
        $region52: #{tpu_custom_call.1} parent=43 // pred_fallthru
          _
        // Predicated region
        $region53: #{tpu_custom_call.1} parent=43 // pred_check
          %p1017 = pneg %p199
        $region54: #{tpu_custom_call.1} parent=43 // pred_check_branch
          %1019 = sbr.rel (%p1017) target = $region56
        $region55: #{tpu_custom_call.1} parent=43 // pred_region
          %s1020 = smul.u32 2, %s22
          %s1022 = ssub.s32 256, 256
          %1023 = vsyncadd [#allocation4], %s1022
          %s1024 = smul.addr %s1020, 128
          %s1025 = scalar_lea.hbm %s6, %s1024
          %s1026 = sshll.u32 [#allocation3], 4
          %s1027 = int_to_ptr.vmem [resolvable:$true] %s1026
          %1032 = dma.vmem_to_hbm [thread:$0]  %s1027, 256, %s1025, [#allocation4], 128, 128, 8
        $region56: #{tpu_custom_call.1} parent=43 // pred_fallthru
          _
        // Predicated region
        $region57: #{tpu_custom_call.1} parent=43 // pred_check
          %p1033 = pneg %p199
        $region58: #{tpu_custom_call.1} parent=43 // pred_check_branch
          %1035 = sbr.rel (%p1033) target = $region60
        $region59: #{tpu_custom_call.1} parent=43 // pred_region
          %1036 = dma.done [#allocation4], 256
        $region60: #{tpu_custom_call.1} parent=43 // pred_fallthru
          _
      $region44: #{tpu_custom_call.1} parent=5 // pred_fallthru
        _
      %p1037 = scmp.le.s32.totalorder 2, %s13
      // Predicated region
      $region61: #{tpu_custom_call.1} parent=5 // pred_check
        %p1038 = pneg %p1037
      $region62: #{tpu_custom_call.1} parent=5 // pred_check_branch
        %1040 = sbr.rel (%p1038) target = $region64
      $region63: #{tpu_custom_call.1} parent=5 // pred_region
        %s1041 = ssub.s32 %s13, 2
      $region64: #{tpu_custom_call.1} parent=5 // pred_fallthru
        _
    $region6: #{tpu_custom_call.1} parent=1 // loop_footer
      %s17 = sadd.s32 1, %s13
    $region7: #{tpu_custom_call.1} parent=1 // loop_footer_branch
      %12 = sbr.rel target = $region3
    $region8: #{tpu_custom_call.1} parent=1 // loop_exit
      _
    %1042 = vsyncpa [#allocation4], 1
    %s1043 = scalar_lea.sflag [#allocation4], 1
    %1044 = vsyncpa %s1043, 1

</llo_original>
